<compile_context>
chip_gen: v6e
topology: v6e:2x2x1
jax: 0.10.0
libtpu: 0.0.40
codegen_flags: <defaults>
</compile_context>

<pallas_src>
import functools

import jax
import jax.numpy as jnp
from jax.experimental import pallas as pl
from jax.experimental.pallas import tpu as pltpu

EPS = 1e-5
LANE = 128


# ---------------------------------------------------------------------------
# Pass 1: stream x, accumulate per batch-partition the augmented moment matrix
#   A = sum_n [x;1][x;1]^T   (shape (C0+1, C0+1))
# Grid = (B*split, tiles_per_split).  Pure streaming DMA + one tiny MXU matmul
# per tile; no per-tile cross-lane reductions.
# ---------------------------------------------------------------------------
def _x_moments_kernel(x_ref, out_ref, a_s):
    t = pl.program_id(1)

    @pl.when(t == 0)
    def _init():
        a_s[...] = jnp.zeros_like(a_s)

    x = x_ref[0].astype(jnp.float32)                       # (C0, TN)
    ones = jnp.ones((1, x.shape[1]), jnp.float32)
    xa = jnp.concatenate([x, ones], axis=0)                # (C0+1, TN)
    a_s[...] += jax.lax.dot_general(
        xa, xa, (((1,), (1,)), ((), ())), preferred_element_type=jnp.float32)

    @pl.when(t == pl.num_programs(1) - 1)
    def _fin():
        out_ref[0] = a_s[...]


# ---------------------------------------------------------------------------
# Pass 2: stream x again.  At t==0 the global BN1 statistics are recovered from
# the pass-1 moments and folded into the conv1 weight/bias (scratch).  Per tile:
# conv1 + BN1 + ReLU, conv2 (bias folded out), then lane-dense accumulation of
# sum / sumsq / max / min of the pre-BN conv2 output.  The cross-lane reduction
# and the (1, 4, C2) output write happen only on the last tile.
# ---------------------------------------------------------------------------
def _conv_pool_kernel(mom_ref, x_ref, w1_ref, b1_ref, g1_ref, be1_ref, w2_ref,
                      out_ref, w1s_s, b1s_s, s_s, q_s, mx_s, mn_s, *, n_total):
    t = pl.program_id(1)
    c0 = w1_ref.shape[1]
    tn = x_ref.shape[2]
    inv_n = 1.0 / float(n_total)

    # ---- once per batch partition: BN1 stats from moments, fold into conv1 --
    @pl.when(t == 0)
    def _prep():
        A = jnp.sum(mom_ref[...], axis=0)                  # global (C0+1, C0+1)
        w1 = w1_ref[...].astype(jnp.float32)               # (C1, C0)
        b1 = b1_ref[...]                                   # (C1, 1) f32
        w1a = jnp.concatenate([w1, b1], axis=1)            # (C1, C0+1)
        t1 = jnp.zeros_like(w1a)
        for i in range(c0 + 1):                            # tiny static unroll
            t1 = t1 + w1a[:, i:i + 1] * A[i:i + 1, :]
        s1 = t1[:, c0:c0 + 1]                              # Σ h1      (C1, 1)
        q1 = jnp.sum(t1 * w1a, axis=1, keepdims=True)      # Σ h1²     (C1, 1)
        mu1 = s1 * inv_n
        var1 = jnp.maximum(q1 * inv_n - mu1 * mu1, 0.0)
        sc1 = g1_ref[...] * jax.lax.rsqrt(var1 + EPS)
        sh1 = be1_ref[...] - mu1 * sc1
        w1s_s[...] = w1 * sc1                              # BN1 folded into conv1
        b1s_s[...] = b1 * sc1 + sh1
        s_s[...] = jnp.zeros_like(s_s)
        q_s[...] = jnp.zeros_like(q_s)
        mx_s[...] = jnp.full_like(mx_s, -jnp.inf)
        mn_s[...] = jnp.full_like(mn_s, jnp.inf)

    # ---- streamed conv stack on this tile -----------------------------------
    xf = x_ref[0].astype(jnp.float32)                      # (C0, TN)
    a1 = jnp.maximum(
        jnp.dot(w1s_s[...], xf, preferred_element_type=jnp.float32) + b1s_s[...],
        0.0)                                               # (C1, TN) f32
    a1 = a1.astype(w2_ref.dtype)                           # bf16 path: feed the MXU
    z2 = jnp.dot(w2_ref[...], a1, preferred_element_type=jnp.float32)  # (C2, TN)

    if tn % LANE == 0:
        # Lane-dense accumulation: per-tile VPU elementwise ops only.
        s, q = s_s[...], q_s[...]
        mx, mn = mx_s[...], mn_s[...]
        for j in range(tn // LANE):
            zj = z2[:, j * LANE:(j + 1) * LANE]
            s = s + zj
            q = q + zj * zj
            mx = jnp.maximum(mx, zj)
            mn = jnp.minimum(mn, zj)
        s_s[...], q_s[...] = s, q
        mx_s[...], mn_s[...] = mx, mn

        @pl.when(t == pl.num_programs(1) - 1)
        def _fin():
            out_ref[0] = jnp.stack(
                [jnp.sum(s_s[...], axis=1), jnp.sum(q_s[...], axis=1),
                 jnp.max(mx_s[...], axis=1), jnp.min(mn_s[...], axis=1)],
                axis=0)
    else:
        # npoints not a multiple of 128: the planner guarantees a single
        # full-N tile (and split == 1), so reduce directly.
        out_ref[0] = jnp.stack(
            [jnp.sum(z2, axis=1), jnp.sum(z2 * z2, axis=1),
             jnp.max(z2, axis=1), jnp.min(z2, axis=1)], axis=0)


# ---------------------------------------------------------------------------
# FC head (tiny, un-gridded, fully VMEM resident): finish BN2 + the max-pool
# from the packed per-partition stats, then Linear+BN+ReLU x2 and the
# zero-initialised projection + identity.
# ---------------------------------------------------------------------------
def _fc_head_kernel(stats_ref, b2_ref, g2_ref, be2_ref,
                    wf1_ref, bf1_ref, gf1_ref, bef1_ref,
                    wf2_ref, bf2_ref, gf2_ref, bef2_ref,
                    wp_ref, bp_ref, eye_ref, out_ref, *, batch, split, n_total):
    f32 = jnp.float32
    n = float(n_total)
    stats = stats_ref[...]                                 # (B*split, 4, C2) f32
    b2, g2, be2 = b2_ref[...], g2_ref[...], be2_ref[...]   # (1, C2)

    # BN2 statistics (stats hold sums of z2 = conv2 output WITHOUT bias).
    tot = jnp.sum(stats, axis=0)                           # (4, C2)
    sz = tot[0:1, :]
    s2 = sz + n * b2                                       # Σ h2
    q2 = tot[1:2, :] + 2.0 * b2 * sz + n * (b2 * b2)       # Σ h2²
    mu2 = s2 / n
    var2 = jnp.maximum(q2 / n - mu2 * mu2, 0.0)
    sc2 = g2 * jax.lax.rsqrt(var2 + EPS)
    sh2 = be2 - mu2 * sc2

    # Per-batch extrema, combining the point-axis split partitions (s-major).
    zmax = stats[0:batch, 2, :]
    zmin = stats[0:batch, 3, :]
    for s in range(1, split):
        zmax = jnp.maximum(zmax, stats[s * batch:(s + 1) * batch, 2, :])
        zmin = jnp.minimum(zmin, stats[s * batch:(s + 1) * batch, 3, :])
    hmax = zmax + b2                                       # (B, C2)
    hmin = zmin + b2
    # Exact because BN2 is a per-channel monotone affine map and ReLU is
    # monotone: max_n ReLU(BN2(h2)) == ReLU(max(hmax*sc2, hmin*sc2) + sh2).
    pooled = jnp.maximum(hmax * sc2, hmin * sc2) + sh2
    f = jnp.maximum(pooled, 0.0)                           # (B, C2)

    def bn_rows(h, g, be):                                 # training-mode BatchNorm1d
        mu = jnp.mean(h, axis=0, keepdims=True)
        var = jnp.mean((h - mu) ** 2, axis=0, keepdims=True)
        return (h - mu) * jax.lax.rsqrt(var + EPS) * g + be

    f = jnp.dot(f, wf1_ref[...], preferred_element_type=f32) + bf1_ref[...]
    f = jnp.maximum(bn_rows(f, gf1_ref[...], bef1_ref[...]), 0.0)
    f = jnp.dot(f, wf2_ref[...], preferred_element_type=f32) + bf2_ref[...]
    f = jnp.maximum(bn_rows(f, gf2_ref[...], bef2_ref[...]), 0.0)
    o = jnp.dot(f, wp_ref[...], preferred_element_type=f32) + bp_ref[...]
    out_ref[...] = (o + eye_ref[...]).astype(out_ref.dtype)


# ---------------------------------------------------------------------------
# Wrapper
# ---------------------------------------------------------------------------
def _vmem_limit_bytes():
    """~3/4 of physical VMEM, capped at 64 MiB (v5e/v6e: 128 MiB -> 64 MiB,
    v7x: 64 MiB -> 48 MiB)."""
    cap = 64 * 1024 * 1024
    try:
        cap = int(pltpu.get_tpu_info().vmem_capacity_bytes)
    except Exception:
        pass
    return min(cap * 3 // 4, 64 * 1024 * 1024)


def _plan_tiling(n, c0, c1, c2, itemsize, batch, step_budget):
    """Pick (tile_n, split): as few / as fat point tiles as fit the per-step
    VMEM budget; split the point axis only when the batch axis alone cannot
    feed both v7x TensorCores."""
    def step_bytes(tn):
        per_point = (2 * c0 * itemsize           # x block (double-buffered)
                     + c0 * 4                    # f32 copy of the x tile
                     + c1 * 4 + c1 * itemsize    # a1 (f32) + MXU-dtype cast
                     + 2 * c2 * 4)               # z2 (f32) + slack
        return tn * per_point + 512 * 1024       # scratch / constants slack

    if n % LANE != 0:
        return n, 1          # single full-N block: always a legal BlockSpec
    tn = LANE
    for cand in range(LANE, n + 1, LANE):
        if n % cand == 0 and step_bytes(cand) <= step_budget:
            tn = cand
    split = 1
    if batch == 1:           # v7x: give the second TensorCore some work
        n_tiles = n // tn
        if n_tiles % 2 == 0:
            split = 2
        elif tn % (2 * LANE) == 0:
            tn //= 2
            split = 2
    return tn, split


def stnkd_forward(x, params, K=2, *, compute_dtype=jnp.bfloat16, tile_n=None,
                  interpret=False):
    """STNkD forward. x: (B, nfeat, npoints), channels-first like the PyTorch
    module.  compute_dtype is the HBM-streaming / MXU dtype of the conv passes
    (bf16 default); all BatchNorm statistics and accumulators stay in f32."""
    f32 = jnp.float32
    B, C0, N = x.shape
    C1 = params["w1"].shape[0]
    C2 = params["w2"].shape[0]
    F1 = params["wf1"].shape[1]
    F2 = params["wf2"].shape[1]
    KK = params["wp"].shape[1]
    assert KK == K * K

    itemsize = jnp.dtype(compute_dtype).itemsize
    vmem_limit = _vmem_limit_bytes()
    if tile_n is None:
        tn, split = _plan_tiling(N, C0, C1, C2, itemsize, B,
                                 min(vmem_limit // 4, 16 * 1024 * 1024))
    else:
        tn, split = tile_n, 1
        assert N % tn == 0, "npoints must be divisible by tile_n"
    n_tiles = max(N // tn, 1)
    assert n_tiles % split == 0
    tps = n_tiles // split            # point tiles per grid step (axis 1)
    P = B * split                     # parallel grid axis (s-major: p = s*B + b)

    xc = x.astype(compute_dtype)
    w1 = params["w1"].astype(compute_dtype)                # (C1, C0)
    w2 = params["w2"].astype(compute_dtype)                # (C2, C1)
    b1 = params["b1"].astype(f32).reshape(C1, 1)
    g1 = params["g1"].astype(f32).reshape(C1, 1)
    be1 = params["be1"].astype(f32).reshape(C1, 1)
    b2 = params["b2"].astype(f32).reshape(1, C2)
    g2 = params["g2"].astype(f32).reshape(1, C2)
    be2 = params["be2"].astype(f32).reshape(1, C2)

    if split == 1:
        def x_index(p, t):
            return (p, 0, t)
    else:
        def x_index(p, t):
            return (p % B, 0, (p // B) * tps + t)
    x_spec = pl.BlockSpec((1, C0, tn), x_index)

    def rep(shape):                   # grid-resident (replicated) block
        return pl.BlockSpec(shape, lambda p, t: (0,) * len(shape))

    def acc_spec(d1, d2):             # per-partition accumulator output
        return pl.BlockSpec((1, d1, d2), lambda p, t: (p, 0, 0))

    cparams = pltpu.CompilerParams(
        dimension_semantics=("parallel", "arbitrary"),
        vmem_limit_bytes=vmem_limit,
    )

    # ---- pass 1: augmented moments of x --------------------------------------
    mom = pl.pallas_call(
        _x_moments_kernel,
        grid=(P, tps),
        in_specs=[x_spec],
        out_specs=acc_spec(C0 + 1, C0 + 1),
        out_shape=jax.ShapeDtypeStruct((P, C0 + 1, C0 + 1), f32),
        scratch_shapes=[pltpu.VMEM((C0 + 1, C0 + 1), f32)],
        compiler_params=cparams,
        cost_estimate=pl.CostEstimate(
            flops=2 * B * N * (C0 + 1) * (C0 + 1), transcendentals=0,
            bytes_accessed=B * N * C0 * itemsize),
        interpret=interpret,
    )(xc)

    # ---- pass 2: BN1(folded)+ReLU -> conv2 -> BN2 stats + per-batch extrema --
    stats = pl.pallas_call(
        functools.partial(_conv_pool_kernel, n_total=B * N),
        grid=(P, tps),
        in_specs=[rep((P, C0 + 1, C0 + 1)), x_spec, rep((C1, C0)), rep((C1, 1)),
                  rep((C1, 1)), rep((C1, 1)), rep((C2, C1))],
        out_specs=acc_spec(4, C2),
        out_shape=jax.ShapeDtypeStruct((P, 4, C2), f32),
        scratch_shapes=[pltpu.VMEM((C1, C0), f32), pltpu.VMEM((C1, 1), f32),
                        pltpu.VMEM((C2, LANE), f32), pltpu.VMEM((C2, LANE), f32),
                        pltpu.VMEM((C2, LANE), f32), pltpu.VMEM((C2, LANE), f32)],
        compiler_params=cparams,
        cost_estimate=pl.CostEstimate(
            flops=2 * B * N * (C0 * C1 + C1 * C2) + 6 * B * N * C2,
            transcendentals=0,
            bytes_accessed=B * N * C0 * itemsize + (C1 * C0 + C2 * C1) * itemsize),
        interpret=interpret,
    )(mom, xc, w1, b1, g1, be1, w2)

    # ---- FC head: finish BN2 + pooling, Linear+BN+ReLU x2, proj + identity ---
    eye = jnp.eye(K, dtype=f32).reshape(1, KK)
    head_args = [
        stats, b2, g2, be2,
        params["wf1"].astype(f32), params["bf1"].astype(f32).reshape(1, F1),
        params["gf1"].astype(f32).reshape(1, F1), params["bef1"].astype(f32).reshape(1, F1),
        params["wf2"].astype(f32), params["bf2"].astype(f32).reshape(1, F2),
        params["gf2"].astype(f32).reshape(1, F2), params["bef2"].astype(f32).reshape(1, F2),
        params["wp"].astype(f32), params["bp"].astype(f32).reshape(1, KK),
        eye,
    ]
    vmem = pl.BlockSpec(memory_space=pltpu.MemorySpace.VMEM)
    out = pl.pallas_call(
        functools.partial(_fc_head_kernel, batch=B, split=split, n_total=B * N),
        out_shape=jax.ShapeDtypeStruct((B, KK), f32),
        in_specs=[vmem] * len(head_args),
        out_specs=vmem,
        interpret=interpret,
    )(*head_args)
    return out.reshape(B, K, K)


# ---------------------------------------------------------------------------
# Synthetic parameters + pure-JAX reference (PyTorch training-mode math)
# ---------------------------------------------------------------------------
def init_params(key, nfeat=4, nf_conv=(32, 64), nf_fc=(32, 16), K=2):
    """Conv weights stored (out, in) like PyTorch Conv1d (kernel-size-1 squeezed),
    fc weights stored (in, out); proj weight/bias zero per nn.init.constant."""
    n_layers = len(nf_conv) + len(nf_fc)
    ks = iter(jax.random.split(key, 4 * n_layers))
    p = {}
    c_in = nfeat
    for i, c_out in enumerate(nf_conv, start=1):
        p[f"w{i}"] = 0.1 * jax.random.normal(next(ks), (c_out, c_in), jnp.float32)
        p[f"b{i}"] = 0.05 * jax.random.normal(next(ks), (c_out,), jnp.float32)
        p[f"g{i}"] = 1.0 + 0.1 * jax.random.normal(next(ks), (c_out,), jnp.float32)
        p[f"be{i}"] = 0.05 * jax.random.normal(next(ks), (c_out,), jnp.float32)
        c_in = c_out
    for i, c_out in enumerate(nf_fc, start=1):
        p[f"wf{i}"] = 0.1 * jax.random.normal(next(ks), (c_in, c_out), jnp.float32)
        p[f"bf{i}"] = 0.05 * jax.random.normal(next(ks), (c_out,), jnp.float32)
        p[f"gf{i}"] = 1.0 + 0.1 * jax.random.normal(next(ks), (c_out,), jnp.float32)
        p[f"bef{i}"] = 0.05 * jax.random.normal(next(ks), (c_out,), jnp.float32)
        c_in = c_out
    p["wp"] = jnp.zeros((c_in, K * K), jnp.float32)
    p["bp"] = jnp.zeros((K * K,), jnp.float32)
    return p


def stnkd_reference(x, params, K=2, compute_dtype=jnp.float32):
    """Pure-JAX reference with the module's training-mode math (channels-first)."""
    f32 = jnp.float32
    h = x.astype(compute_dtype)                            # (B, C0, N)
    for i in (1, 2):
        w = params[f"w{i}"].astype(compute_dtype)
        h = jnp.einsum("oc,bcn->bon", w, h, preferred_element_type=f32)
        h = h + params[f"b{i}"].astype(f32)[None, :, None]
        mu = jnp.mean(h, axis=(0, 2), keepdims=True)
        var = jnp.mean((h - mu) ** 2, axis=(0, 2), keepdims=True)
        h = (h - mu) * jax.lax.rsqrt(var + EPS) * params[f"g{i}"].astype(f32)[None, :, None] \
            + params[f"be{i}"].astype(f32)[None, :, None]
        h = jnp.maximum(h, 0.0)
        if i == 1:
            h = h.astype(compute_dtype)    # mirror the kernel's conv2-input cast
    f = jnp.max(h, axis=2).astype(f32)                     # global max-pool
    for i in (1, 2):
        f = f @ params[f"wf{i}"].astype(f32) + params[f"bf{i}"].astype(f32)
        mu = jnp.mean(f, axis=0, keepdims=True)
        var = jnp.mean((f - mu) ** 2, axis=0, keepdims=True)
        f = (f - mu) * jax.lax.rsqrt(var + EPS) * params[f"gf{i}"].astype(f32) \
            + params[f"bef{i}"].astype(f32)
        f = jnp.maximum(f, 0.0)
    o = f @ params["wp"].astype(f32) + params["bp"].astype(f32)
    o = o + jnp.eye(K, dtype=f32).reshape(1, K * K)
    return o.reshape(-1, K, K)


if __name__ == "__main__":
    key = jax.random.PRNGKey(0)
    k_x, k_p, k_wp, k_bp, k_g2, k_x1 = jax.random.split(key, 6)

    B, nfeat, npoints, K = 8, 4, 256, 2
    x = jax.random.normal(k_x, (B, nfeat, npoints), jnp.float32)

    # Module-faithful parameters: proj weight & bias zero (nn.init.constant),
    # so the output must be exactly the KxK identity for every batch element.
    params = init_params(k_p, nfeat=nfeat, nf_conv=(32, 64), nf_fc=(32, 16), K=K)
    out = jax.block_until_ready(stnkd_forward(x, params, K=K))  # default bf16 path
    assert out.shape == (B, K, K)
    assert bool(jnp.all(jnp.isfinite(out)))
    assert bool(jnp.allclose(out, jnp.eye(K, dtype=jnp.float32)[None], atol=1e-5))

    # Non-vacuous validation: random projection weights/bias and mixed-sign BN2
    # gammas (exercises both branches of the monotone max/min pooling), with the
    # point axis actually tiled (tile_n=128 -> lane-dense accumulation over 2 tiles).
    vparams = dict(params)
    vparams["wp"] = 0.2 * jax.random.normal(k_wp, params["wp"].shape, jnp.float32)
    vparams["bp"] = 0.1 * jax.random.normal(k_bp, params["bp"].shape, jnp.float32)
    vparams["g2"] = 0.7 * jax.random.normal(k_g2, params["g2"].shape, jnp.float32)

    out_f32 = jax.block_until_ready(
        stnkd_forward(x, vparams, K=K, tile_n=128, compute_dtype=jnp.float32))
    ref_f32 = stnkd_reference(x, vparams, K=K)
    assert bool(jnp.allclose(out_f32, ref_f32, atol=1e-3, rtol=1e-3))

    # Default bf16 streaming path vs a bf16-mirroring reference.
    out_bf16 = jax.block_until_ready(stnkd_forward(x, vparams, K=K))
    ref_bf16 = stnkd_reference(x, vparams, K=K, compute_dtype=jnp.bfloat16)
    assert bool(jnp.allclose(out_bf16, ref_bf16, atol=5e-2, rtol=5e-2))

    # B == 1 exercises the v7x point-axis split (both TensorCores get work).
    x1 = jax.random.normal(k_x1, (1, nfeat, 512), jnp.float32)
    out_b1 = jax.block_until_ready(
        stnkd_forward(x1, vparams, K=K, compute_dtype=jnp.float32))
    ref_b1 = stnkd_reference(x1, vparams, K=K)
    assert bool(jnp.allclose(out_b1, ref_b1, atol=1e-3, rtol=1e-3))

    print("KERNEL_OK")
</pallas_src>

<mosaic_0001>
module attributes {stable_mosaic.version = 11 : i64} {
  func.func @_x_moments_kernel(%arg0: i32, %arg1: i32, %arg2: memref<1x4x256xbf16, #tpu.memory_space<vmem>>, %arg3: memref<1x5x5xf32, #tpu.memory_space<vmem>>, %arg4: memref<5x5xf32, #tpu.memory_space<vmem>>) attributes {dimension_semantics = [#tpu.dimension_semantics<parallel>, #tpu.dimension_semantics<arbitrary>], iteration_bounds = array<i64: 8, 1>, scalar_prefetch = 0 : i64, scratch_operands = 1 : i64, tpu.core_type = #tpu.core_type<tc>, window_params = [{transform_indices = @transform_0, window_bounds = array<i64: 1, 4, 256>}, {transform_indices = @transform_1, window_bounds = array<i64: 1, 5, 5>}]} {
    %c0_i32 = arith.constant 0 : i32
    %0 = arith.cmpi eq, %arg1, %c0_i32 : i32
    %1 = arith.extui %0 : i1 to i32
    %c0_i32_0 = arith.constant 0 : i32
    %2 = arith.cmpi ne, %1, %c0_i32_0 : i32
    scf.if %2 {
      %cst_10 = arith.constant 0.000000e+00 : f32
      %15 = vector.broadcast %cst_10 : f32 to vector<5x5xf32>
      %c0_11 = arith.constant 0 : index
      %c0_12 = arith.constant 0 : index
      %16 = vector.load %arg4[%c0_11, %c0_12] : memref<5x5xf32, #tpu.memory_space<vmem>>, vector<5x5xf32>
      tpu.vector_store %arg4[%c0_11, %c0_12], %15 {strides = array<i32>} : memref<5x5xf32, #tpu.memory_space<vmem>>, vector<5x5xf32>,
    } else {
    }
    %c0 = arith.constant 0 : index
    %c0_1 = arith.constant 0 : index
    %c0_2 = arith.constant 0 : index
    %3 = vector.load %arg2[%c0, %c0_1, %c0_2] : memref<1x4x256xbf16, #tpu.memory_space<vmem>>, vector<1x4x256xbf16>
    %4 = vector.shape_cast %3 : vector<1x4x256xbf16> to vector<4x256xbf16>
    %5 = arith.extf %4 : vector<4x256xbf16> to vector<4x256xf32>
    %cst = arith.constant 1.000000e+00 : f32
    %6 = vector.broadcast %cst : f32 to vector<1x256xf32>
    %7 = tpu.concatenate %5, %6 in 0 : vector<4x256xf32>, vector<1x256xf32> -> vector<5x256xf32>
    %c0_3 = arith.constant 0 : index
    %c0_4 = arith.constant 0 : index
    %8 = vector.load %arg4[%c0_3, %c0_4] : memref<5x5xf32, #tpu.memory_space<vmem>>, vector<5x5xf32>
    %cst_5 = arith.constant dense<0.000000e+00> : vector<5x5xf32>
    %9 = tpu.matmul %7, %7, %cst_5 {dimension_numbers = #tpu.dot_dimension_numbers<[1], [1], [0], [0], [0, 0, 1, 0], [], []>} : vector<5x256xf32>, vector<5x256xf32>, vector<5x5xf32> -> vector<5x5xf32>
    %10 = arith.addf %8, %9 : vector<5x5xf32>
    %c0_6 = arith.constant 0 : index
    %c0_7 = arith.constant 0 : index
    %11 = vector.load %arg4[%c0_6, %c0_7] : memref<5x5xf32, #tpu.memory_space<vmem>>, vector<5x5xf32>
    tpu.vector_store %arg4[%c0_6, %c0_7], %10 {strides = array<i32>} : memref<5x5xf32, #tpu.memory_space<vmem>>, vector<5x5xf32>,
    %c0_i32_8 = arith.constant 0 : i32
    %12 = arith.cmpi eq, %arg1, %c0_i32_8 : i32
    %13 = arith.extui %12 : i1 to i32
    %c0_i32_9 = arith.constant 0 : i32
    %14 = arith.cmpi ne, %13, %c0_i32_9 : i32
    scf.if %14 {
      %c0_10 = arith.constant 0 : index
      %c0_11 = arith.constant 0 : index
      %15 = vector.load %arg4[%c0_10, %c0_11] : memref<5x5xf32, #tpu.memory_space<vmem>>, vector<5x5xf32>
      %c0_12 = arith.constant 0 : index
      %c0_13 = arith.constant 0 : index
      %c0_14 = arith.constant 0 : index
      %16 = vector.load %arg3[%c0_12, %c0_13, %c0_14] : memref<1x5x5xf32, #tpu.memory_space<vmem>>, vector<1x5x5xf32>
      %17 = vector.shape_cast %16 : vector<1x5x5xf32> to vector<5x5xf32>
      %18 = vector.shape_cast %15 : vector<5x5xf32> to vector<1x5x5xf32>
      tpu.vector_store %arg3[%c0_12, %c0_13, %c0_14], %18 {strides = array<i32>} : memref<1x5x5xf32, #tpu.memory_space<vmem>>, vector<1x5x5xf32>,
    } else {
    }
    return
  }
  func.func @transform_0(%arg0: i32, %arg1: i32) -> (i32, i32, i32) {
    %c0_i32 = arith.constant 0 : i32
    %c0_i32_0 = arith.constant 0 : i32
    return %arg0, %c0_i32, %arg1 : i32, i32, i32
  }
  func.func @transform_1(%arg0: i32, %arg1: i32) -> (i32, i32, i32) {
    %c0_i32 = arith.constant 0 : i32
    %c0_i32_0 = arith.constant 0 : i32
    %c0_i32_1 = arith.constant 0 : i32
    return %arg0, %c0_i32, %c0_i32_0 : i32, i32, i32
  }
}

</mosaic_0001>

<llo_original>
// kernel: tpu_custom_call.1
$region0: #{tpu_custom_call.1}
  #allocation0 [shape = 'u32[]', space=smem, size = 0x4, offset = 0x4, fixed_abs, tag = 'smem constant byte address 0x4 - core index']
  #allocation1 [shape = 'u32[144,128]{1,0:T(1,128)}', space=vmem, size = 0x12000, scoped, tag = 'internal scratch']
  #allocation2 [shape = 'f32[5,5]{1,0:T(8,128)}', space=vmem, size = 0x1000, scoped, tag = 'scratch operand']
  %s0 = inlined_call_operand.hbm [shape: bf16[8,4,256], index: 0, kind: input, shape index: {}]
  %s1 = inlined_call_operand.vmem [shape: f32[8,5,5], index: 1, kind: output, shape index: {}]
  %s2 = sld [smem:[#allocation0]]
  $region49: #{tpu_custom_call.1} parent=0
    _
  %s4 = ssub.s32 1, %s2
  %s5 = scalar_select 0, %s4, %s2
  $region1: #{tpu_custom_call.1} parent=0
    #allocation3 [shape = 'u8[4096]{0}', space=vmem, size = 0x1000, scoped, tag = 'input window, operand 0']
    #allocation4 [shape = 's32[2]{0}', space=sflag, size = 0x8, scoped, tag = 'scoped memory for tpu_custom_call.1']
    %6 = vsyncpa [#allocation4], 0
    %s7 = scalar_lea.sflag [#allocation4], 1
    %8 = vsyncpa %s7, 0
    loop: start=0, step=1, limit=10
    $region2: #{tpu_custom_call.1} parent=1 // loop_pre_header
      _
    $region3: #{tpu_custom_call.1} parent=1 // loop_header
      %s10 = sphi 0, %s14
      %p11 = scmp.ge.s32.totalorder %s10, 10
      %s17 = sphi 0, %s29
      %s18 = sphi 0, %s25
      %s19 = sphi 0, %s17
      %s20 = sphi 0, %s18
      %s21 = sphi 0, %s19
      %s22 = sphi 0, %s20
      %s34 = sphi 0, %s36
      %s37 = sphi 0, %s34
      %s38 = sphi 0, %s37
      %s54 = sphi 0, %s38
      %s60 = sphi 0, %s62
      %s63 = sphi 0, %s60
      %s64 = sphi 0, %s63
      %s80 = sphi 0, %s64
    $region4: #{tpu_custom_call.1} parent=1 // loop_header_branch
      %13 = sbr.rel (%p11) target = $region8
    $region5: #{tpu_custom_call.1} parent=1 // loop_body
      %s15 = ssub.s32 %s10, 1
      %s16 = ssub.s32 %s10, 2
      %s23 = sadd.s32 1, %s18
      %p24 = scmp.ge.s32.totalorder %s23, 1
      %s25 = scalar_select %p24, 0, %s23
      %s26 = sadd.s32 1, %s17
      %s27 = scalar_select %p24, %s26, %s17
      %p28 = scmp.ge.s32.totalorder %s27, 8
      %s29 = scalar_select %p28, 0, %s27
      %s30 = ssub.s32 %s17, %s29
      %s31 = ssub.s32 %s18, %s25
      %s32 = sor.u32 %s30, %s31
      %p33 = scmp.eq.s32.totalorder %s32, 0
      %s35 = sadd.s32 %s34, 1
      %s36 = scalar_select %p33, %s34, %s35
      %p39 = pneg %p33
      %p40 = scmp.eq.s32.totalorder %s10, 7
      %p41 = por %p39, %p40
      %p42 = scmp.ne.s32.totalorder %s34, %s37
      %p43 = scmp.eq.s32.totalorder %s10, 0
      %p44 = por %p42, %p43
      %p45 = scmp.ne.s32.totalorder %s34, %s37
      %p46 = scmp.eq.s32.totalorder %s15, 7
      %p47 = por %p45, %p46
      %p48 = scmp.ne.s32.totalorder %s37, %s38
      %p49 = scmp.eq.s32.totalorder %s15, 0
      %p50 = por %p48, %p49
      %p51 = scmp.ne.s32.totalorder %s37, %s38
      %p52 = scmp.eq.s32.totalorder %s16, 7
      %p53 = por %p51, %p52
      %p55 = scmp.ne.s32.totalorder %s38, %s54
      %p56 = scmp.eq.s32.totalorder %s16, 0
      %p57 = por %p55, %p56
      %s58 = ssub.s32 %s17, %s29
      %p59 = scmp.eq.s32.totalorder %s58, 0
      %s61 = sadd.s32 %s60, 1
      %s62 = scalar_select %p59, %s60, %s61
      %p65 = pneg %p59
      %p66 = scmp.eq.s32.totalorder %s10, 7
      %p67 = por %p65, %p66
      %p68 = scmp.ne.s32.totalorder %s60, %s63
      %p69 = scmp.eq.s32.totalorder %s10, 0
      %p70 = por %p68, %p69
      %p71 = scmp.ne.s32.totalorder %s60, %s63
      %p72 = scmp.eq.s32.totalorder %s15, 7
      %p73 = por %p71, %p72
      %p74 = scmp.ne.s32.totalorder %s63, %s64
      %p75 = scmp.eq.s32.totalorder %s15, 0
      %p76 = por %p74, %p75
      %p77 = scmp.ne.s32.totalorder %s63, %s64
      %p78 = scmp.eq.s32.totalorder %s16, 7
      %p79 = por %p77, %p78
      %p81 = scmp.ne.s32.totalorder %s64, %s80
      %p82 = scmp.eq.s32.totalorder %s16, 0
      %p83 = por %p81, %p82
      %p84 = scmp.le.s32.totalorder 1, %s10
      %p85 = scmp.lt.s32.totalorder %s10, 9
      %p86 = pnand %p84, %p85
      %p87 = pneg %p86
      // Predicated region
      $region9: #{tpu_custom_call.1} parent=5 // pred_check
        _
      $region10: #{tpu_custom_call.1} parent=5 // pred_check_branch
        %89 = sbr.rel (%p86) target = $region12
      $region11: #{tpu_custom_call.1} parent=5 // pred_region
        %s90 = ssub.s32 %s10, 1
      $region12: #{tpu_custom_call.1} parent=5 // pred_fallthru
        _
      %p91 = scmp.lt.s32.totalorder %s10, 8
      // Predicated region
      $region13: #{tpu_custom_call.1} parent=5 // pred_check
        %p92 = pneg %p91
      $region14: #{tpu_custom_call.1} parent=5 // pred_check_branch
        %94 = sbr.rel (%p92) target = $region16
      $region15: #{tpu_custom_call.1} parent=5 // pred_region
        // Predicated region
        $region17: #{tpu_custom_call.1} parent=15 // pred_check
          %p95 = pneg %p44
        $region18: #{tpu_custom_call.1} parent=15 // pred_check_branch
          %97 = sbr.rel (%p95) target = $region20
        $region19: #{tpu_custom_call.1} parent=15 // pred_region
          %s98 = sand.u32 %s34, 1
          %s99 = scalar_lea.sflag [#allocation4], %s98
          %s100 = sand.u32 %s34, 1
          %s101 = smul.addr %s100, 4
          %s102 = scalar_lea.vmem [#allocation3], %s101
          %s103 = smul.u32 2, %s18
          %s105 = ssub.s32 64, 64
          %106 = vsyncadd %s99, %s105
          %s107 = smul.addr %s17, 2
          %s108 = sadd.s32 %s103, %s107
          %s109 = smul.addr %s108, 32
          %s110 = scalar_lea.hbm %s0, %s109
          %s112 = sshll.u32 %s102, 4
          %s113 = int_to_ptr.vmem [resolvable:$true] %s112
          %115 = dma.hbm_to_vmem [thread:$0]  %s110, 64, %s113, %s99
        $region20: #{tpu_custom_call.1} parent=15 // pred_fallthru
          _
      $region16: #{tpu_custom_call.1} parent=5 // pred_fallthru
        _
      %p116 = scmp.le.s32.totalorder 1, %s10
      %p117 = scmp.lt.s32.totalorder %s10, 9
      %p118 = pnand %p116, %p117
      %p119 = pneg %p118
      // Predicated region
      $region21: #{tpu_custom_call.1} parent=5 // pred_check
        _
      $region22: #{tpu_custom_call.1} parent=5 // pred_check_branch
        %121 = sbr.rel (%p118) target = $region24
      $region23: #{tpu_custom_call.1} parent=5 // pred_region
        %s122 = ssub.s32 %s10, 1
        %s123 = sand.u32 %s37, 1
        %s124 = scalar_lea.sflag [#allocation4], %s123
        %s125 = sand.u32 %s37, 1
        %s126 = smul.addr %s125, 4
        %s127 = scalar_lea.vmem [#allocation3], %s126
        // Predicated region
        $region25: #{tpu_custom_call.1} parent=23 // pred_check
          %p128 = pneg %p50
        $region26: #{tpu_custom_call.1} parent=23 // pred_check_branch
          %130 = sbr.rel (%p128) target = $region28
        $region27: #{tpu_custom_call.1} parent=23 // pred_region
          %131 = dma.done %s124, 64
        $region28: #{tpu_custom_call.1} parent=23 // pred_fallthru
          _
        %s132 = sand.u32 %s37, 1
        %s133 = scalar_lea.sflag [#allocation4], %s132
        %s134 = sand.u32 %s37, 1
        %s135 = smul.addr %s134, 4
        %s136 = scalar_lea.vmem [#allocation3], %s135
        %p137 = pneg %p50
        %p138 = pneg %p47
        %p139 = pneg %p76
        %p140 = pneg %p73
        %p141 = scmp.lt.s32.totalorder %s19, 7
        %s142 = scalar_select %p141, %s19, 7
        %s143 = smul.addr %s142, 8
        %s144 = scalar_lea.vmem %s1, %s143
        %s145 = smul.u32 2, %s20
        %p146 = scmp.lt.s32.totalorder %s19, 7
        %s147 = scalar_select %p146, %s19, 7
        %s148 = smul.addr %s147, 8
        %s149 = scalar_lea.vmem %s1, %s148
        %p150 = scmp.eq.s32.totalorder %s20, 0
        // Predicated region
        $region29: #{tpu_custom_call.1} parent=23 // pred_check
          %p151 = pneg %p150
        $region30: #{tpu_custom_call.1} parent=23 // pred_check_branch
          %153 = sbr.rel (%p151) target = $region32
        $region31: #{tpu_custom_call.1} parent=23 // pred_region
          %vm154 = vcmask 36864
          %155 = vst.msk [vmem:[#allocation2] sm:$0x1f] %vm154, 0.0
        $region32: #{tpu_custom_call.1} parent=23 // pred_fallthru
          _
        %v156 = vld [vmem:[%s127] sm:$0xf]
        %v157 = vunpack.c.l.bf16 %v156
        %v159 = vcombine.high %v157, %v157
        %vm161 = vcmask 1043456
        %v162 = vsel %vm161, %v157, 1.0
        %v163 = vsel %vm161, %v159, 1.0
        %v164 = vld [vmem:[#allocation2] sm:$0x1f]
        %165 = vmatprep.subr.mxu0 0.0
        %166 = vmatpush1.xpose.msra.mxu0 0.0
        %167 = vmatprep.subr.mxu0 0.0
        %168 = vmatpush1.xpose.msra.mxu0 0.0
        %169 = vmatprep.subr.mxu0 0.0
        %170 = vmatpush1.xpose.msra.mxu0 0.0
        %171 = vmatprep.subr.mxu0 0.0
        %172 = vmatpush1.xpose.msra.mxu0 0.0
        %173 = vmatprep.subr.mxu0 0.0
        %174 = vmatpush1.xpose.msra.mxu0 0.0
        %175 = vmatprep.subr.mxu0 0.0
        %176 = vmatpush1.xpose.msra.mxu0 0.0
        %177 = vmatprep.subr.mxu0 0.0
        %178 = vmatpush1.xpose.msra.mxu0 0.0
        %179 = vmatprep.subr.mxu0 0.0
        %180 = vmatpush1.xpose.msra.mxu0 0.0
        %181 = vmatprep.subr.mxu0 0.0
        %182 = vmatpush1.xpose.msra.mxu0 0.0
        %183 = vmatprep.subr.mxu0 0.0
        %184 = vmatpush1.xpose.msra.mxu0 0.0
        %185 = vmatprep.subr.mxu0 0.0
        %186 = vmatpush1.xpose.msra.mxu0 0.0
        %187 = vmatprep.subr.mxu0 0.0
        %188 = vmatpush1.xpose.msra.mxu0 0.0
        %189 = vmatprep.subr.mxu0 0.0
        %190 = vmatpush1.xpose.msra.mxu0 0.0
        %191 = vmatprep.subr.mxu0 0.0
        %192 = vmatpush1.xpose.msra.mxu0 0.0
        %193 = vmatprep.subr.mxu0 0.0
        %194 = vmatpush1.xpose.msra.mxu0 0.0
        %195 = vmatprep.subr.mxu0 %v163
        %196 = vmatpush1.xpose.msra.mxu0 %v162
        %197 = vmatprep.subr.mxu0 0.0
        %198 = vmatpush2.xpose.msra.mxu0 0.0
        %199 = vmatprep.subr.mxu0 0.0
        %200 = vmatpush2.xpose.msra.mxu0 0.0
        %201 = vmatprep.subr.mxu0 0.0
        %202 = vmatpush2.xpose.msra.mxu0 0.0
        %203 = vmatprep.subr.mxu0 0.0
        %204 = vmatpush2.xpose.msra.mxu0 0.0
        %205 = vmatprep.subr.mxu0 0.0
        %206 = vmatpush2.xpose.msra.mxu0 0.0
        %207 = vmatprep.subr.mxu0 0.0
        %208 = vmatpush2.xpose.msra.mxu0 0.0
        %209 = vmatprep.subr.mxu0 0.0
        %210 = vmatpush2.xpose.msra.mxu0 0.0
        %211 = vmatprep.subr.mxu0 0.0
        %212 = vmatpush2.xpose.msra.mxu0 0.0
        %213 = vmatprep.subr.mxu0 0.0
        %214 = vmatpush2.xpose.msra.mxu0 0.0
        %215 = vmatprep.subr.mxu0 0.0
        %216 = vmatpush2.xpose.msra.mxu0 0.0
        %217 = vmatprep.subr.mxu0 0.0
        %218 = vmatpush2.xpose.msra.mxu0 0.0
        %219 = vmatprep.subr.mxu0 0.0
        %220 = vmatpush2.xpose.msra.mxu0 0.0
        %221 = vmatprep.subr.mxu0 0.0
        %222 = vmatpush2.xpose.msra.mxu0 0.0
        %223 = vmatprep.subr.mxu0 0.0
        %224 = vmatpush2.xpose.msra.mxu0 0.0
        %225 = vmatprep.subr.mxu0 0.0
        %226 = vmatpush2.xpose.msra.mxu0 0.0
        %227 = vmatprep.subr.mxu0 0.0
        %228 = vmatpush2.xpose.msra.mxu0 0.0
        %229 = vmatprep.mubr.f32.mxu0 %v163
        %230 = vmatmul.mubr.f32.gmra.mxu0 %v162
        %v231 = vpop.f32.mrf.mxu0
        %v232 = vadd.f32 0.0, %v231
        %v233 = vpop.f32.mrf.mxu0
        %234 = vdwg.mxu0
        %v235 = vadd.f32 %v164, %v232
        %vm236 = vcmask 36864
        %237 = vst.msk [vmem:[#allocation2] sm:$0x1f] %vm236, %v235
        // Predicated region
        $region33: #{tpu_custom_call.1} parent=23 // pred_check
          %p238 = pneg %p150
        $region34: #{tpu_custom_call.1} parent=23 // pred_check_branch
          %240 = sbr.rel (%p238) target = $region36
        $region35: #{tpu_custom_call.1} parent=23 // pred_region
          %v241 = vld [vmem:[#allocation2] sm:$0x1f]
          %242 = vst.msk [vmem:[%s149] sm:$0x1f] %vm236, %v241
        $region36: #{tpu_custom_call.1} parent=23 // pred_fallthru
          _
        %p243 = scmp.lt.s32.totalorder %s19, 7
        %s244 = scalar_select %p243, %s19, 7
        %s245 = smul.addr %s244, 8
        %s246 = scalar_lea.vmem %s1, %s245
        // Predicated region
        $region37: #{tpu_custom_call.1} parent=23 // pred_check
          %p247 = pneg %p73
        $region38: #{tpu_custom_call.1} parent=23 // pred_check_branch
          %249 = sbr.rel (%p247) target = $region40
        $region39: #{tpu_custom_call.1} parent=23 // pred_region
          _
        $region40: #{tpu_custom_call.1} parent=23 // pred_fallthru
          _
      $region24: #{tpu_custom_call.1} parent=5 // pred_fallthru
        _
      %p250 = scmp.le.s32.totalorder 2, %s10
      // Predicated region
      $region41: #{tpu_custom_call.1} parent=5 // pred_check
        %p251 = pneg %p250
      $region42: #{tpu_custom_call.1} parent=5 // pred_check_branch
        %253 = sbr.rel (%p251) target = $region44
      $region43: #{tpu_custom_call.1} parent=5 // pred_region
        %s254 = ssub.s32 %s10, 2
        // Predicated region
        $region45: #{tpu_custom_call.1} parent=43 // pred_check
          %p255 = pneg %p79
        $region46: #{tpu_custom_call.1} parent=43 // pred_check_branch
          %257 = sbr.rel (%p255) target = $region48
        $region47: #{tpu_custom_call.1} parent=43 // pred_region
          %p258 = scmp.lt.s32.totalorder %s21, 7
          %s259 = scalar_select %p258, %s21, 7
          %s260 = smul.addr %s259, 8
          %s261 = scalar_lea.vmem %s1, %s260
        $region48: #{tpu_custom_call.1} parent=43 // pred_fallthru
          _
      $region44: #{tpu_custom_call.1} parent=5 // pred_fallthru
        _
    $region6: #{tpu_custom_call.1} parent=1 // loop_footer
      %s14 = sadd.s32 1, %s10
    $region7: #{tpu_custom_call.1} parent=1 // loop_footer_branch
      %9 = sbr.rel target = $region3
    $region8: #{tpu_custom_call.1} parent=1 // loop_exit
      _
    %262 = vsyncpa [#allocation4], 1
    %s263 = scalar_lea.sflag [#allocation4], 1
    %264 = vsyncpa %s263, 1

</llo_original>
